<compile_context>
chip_gen: v7x
topology: tpu7x:2x2x1
jax: 0.10.0
libtpu: 0.0.40
codegen_flags: <defaults>
</compile_context>

<pallas_src>
import functools

import numpy as np
import jax
import jax.numpy as jnp
from jax.experimental import pallas as pl
from jax.experimental.pallas import tpu as pltpu


def _gaussian_1d(radius: int, sigma: float) -> np.ndarray:
    # gaussian_kernel() in the PyTorch module builds
    #   k2[i, j] = norm.pdf(dist)/norm.pdf(0) = exp(-0.5*(di^2 + dj^2)/sigma^2)
    # which factorizes exactly as g[i] * g[j] with g below (g[radius] == 1).
    offs = np.linspace(-radius, radius, 2 * radius + 1)
    return np.exp(-0.5 * (offs / float(sigma)) ** 2).astype(np.float32)


def _num_tensorcores() -> int:
    """Best-effort TensorCore count (v7x has 2); defaults to 1."""
    try:
        info = pltpu.get_tpu_info()
        for name in ("num_cores", "core_count", "num_tensorcores"):
            v = getattr(info, name, None)
            if v:
                return int(v)
    except Exception:
        pass
    try:
        d = jax.devices()[0]
        for name in ("num_cores", "core_count"):
            v = getattr(d, name, None)
            if v:
                return int(v)
    except Exception:
        pass
    return 1


def _vmem_capacity_bytes() -> int:
    try:
        info = pltpu.get_tpu_info()
        return int(getattr(info, "vmem_capacity_bytes", 64 * 1024 * 1024))
    except Exception:
        return 64 * 1024 * 1024


def _blur_kernel(x_ref, o_ref, xpad_ref, ypk_ref, *,
                 w1d, r, h, w, G, PG, S, ROFF, WT):
    """Separable, lane-packed Gaussian blur of PG*G planes.

    xpad_ref: (PG, HP, WS) f32 scratch.  Group p packs G planes along lanes:
      plane slot g's data lives at columns [r + g*S, r + g*S + w), rows
      [ROFF, ROFF+h); everything else stays zero (shared r-wide gaps provide the
      SAME zero padding for the row pass, rows outside the center provide it for
      the column pass).
    ypk_ref: (PG, h, WT) f32 scratch holding the packed blurred result, from which
      per-plane slices are written back to the (nc, H, W) output layout.
    """
    f32 = jnp.float32
    PB = PG * G

    # Clear the packed scratch.  With the lane-packed layout this is only a few
    # aligned full-width stores per group (the scratch is barely larger than the
    # data), which is cheaper in vst count than strip-wise halo zeroing (many
    # narrow masked stores).  It is re-done every step because the scratch is
    # per-core persistent and the plane axis is "parallel" (no pid==0 init).
    xpad_ref[...] = jnp.zeros_like(xpad_ref)

    # Stage each plane into its lane slot (single f32 up-cast).  ROFF = 8 keeps the
    # store sublane-aligned, so each plane needs ceil(h/8) masked stores.
    for j in range(PB):
        p, g = divmod(j, G)
        c0 = r + g * S
        xpad_ref[p, ROFF:ROFF + h, c0:c0 + w] = x_ref[j].astype(f32)

    # Separable row pass (lane axis), lane-dense over all packed planes at once and
    # over h + 2r rows so it is already zero-padded along H for the column pass.
    # Symmetric taps are paired -> one multiply per pair.
    r0, r1 = ROFF - r, ROFF + h + r
    t = w1d[r] * xpad_ref[:, r0:r1, r:r + WT]
    for s in range(1, r + 1):
        t = t + w1d[r + s] * (xpad_ref[:, r0:r1, r + s:r + s + WT] +
                              xpad_ref[:, r0:r1, r - s:r - s + WT])

    # Separable column pass (sublane axis) directly on the in-register row-pass
    # value -- no tpad VMEM round trip (review item).
    y = w1d[r] * t[:, r:r + h, :]
    for s in range(1, r + 1):
        y = y + w1d[r + s] * (t[:, r + s:r + s + h, :] + t[:, r - s:r - s + h, :])
    ypk_ref[...] = y

    # Unpack: per-plane lane slices go back to the (nc, H, W) output layout.
    # (The slot for plane g starts at t/ypk column g*S.)
    for j in range(PB):
        p, g = divmod(j, G)
        o_ref[j] = ypk_ref[p, :, g * S:g * S + w].astype(o_ref.dtype)


def gaussian_blur_2d(x: jax.Array, radius: int = 2, sigma: float = 1.0) -> jax.Array:
    """Equivalent of GaussianBlur2D(radius, sigma).forward(x) for NCHW float input."""
    N, C, H, W = x.shape
    r = int(radius)
    g1d = _gaussian_1d(r, sigma)
    w1d = tuple(float(v) for v in g1d)

    nc = N * C
    planes = x.reshape(nc, H, W)

    # ---- lane-packing geometry ------------------------------------------------
    # Planes packed along lanes with stride S = W + r (data blocks share an r-wide
    # zero gap, which is exactly the SAME padding both neighbours need).
    S = W + r
    if W + 2 * r <= 128:
        G = max(1, (128 - (W + 2 * r)) // S + 1)   # as many slots as fit in 128 lanes
    else:
        G = 1                                       # wide planes are already lane-dense
    G = max(1, min(G, nc))
    WS = (G - 1) * S + W + 2 * r                    # packed scratch width
    WT = WS - 2 * r                                 # row-pass output width
    ROFF = ((r + 7) // 8) * 8 if r > 8 else 8       # aligned top halo (review item 7)
    HP = ROFF + ((H + r + 7) // 8) * 8              # padded scratch rows

    # ---- planes per block (review items 3/4/5) --------------------------------
    itemsize = x.dtype.itemsize
    per_group = (4 * G * H * W * itemsize            # double-buffered in + out blocks
                 + 4 * (HP * WS + H * WT))           # f32 scratch (single-buffered)
    vmem_cap = _vmem_capacity_bytes()
    budget = max(4 << 20, min(vmem_cap // 4, 28 << 20))
    PG = max(1, min(budget // max(per_group, 1),     # VMEM budget
                    max(1, 64 // G),                 # keep the unrolled loops sane
                    nc // G))                        # never exceed the plane count
    # Prefer >= 2 grid steps only on multi-TensorCore parts (v7x); on single-TC
    # v5e/v6e keep the maximal block (review item 4).
    if _num_tensorcores() >= 2 and PG * G >= nc and PG >= 2:
        PG = max(1, PG // 2)
    PB = PG * G
    steps = pl.cdiv(nc, PB)                          # divisor-free grid (review item 5)

    needed = PG * per_group + (1 << 20)
    vmem_limit = int(max(32 << 20, min(2 * needed, (vmem_cap * 3) // 4)))

    kern = functools.partial(_blur_kernel, w1d=w1d, r=r, h=H, w=W,
                             G=G, PG=PG, S=S, ROFF=ROFF, WT=WT)

    out = pl.pallas_call(
        kern,
        out_shape=jax.ShapeDtypeStruct((nc, H, W), x.dtype),
        grid_spec=pltpu.PrefetchScalarGridSpec(
            num_scalar_prefetch=0,
            grid=(steps,),
            in_specs=[pl.BlockSpec((PB, H, W), lambda i: (i, 0, 0))],
            out_specs=pl.BlockSpec((PB, H, W), lambda i: (i, 0, 0)),
            scratch_shapes=[
                pltpu.VMEM((PG, HP, WS), jnp.float32),  # packed, zero-padded input
                pltpu.VMEM((PG, H, WT), jnp.float32),   # packed blurred result
            ],
        ),
        compiler_params=pltpu.CompilerParams(
            dimension_semantics=("parallel",),
            vmem_limit_bytes=vmem_limit,
        ),
    )(planes)

    return out.reshape(N, C, H, W)


if __name__ == "__main__":
    radius, sigma = 2, 1.0
    key = jax.random.PRNGKey(0)
    x = jax.random.normal(key, (2, 4, 16, 16), dtype=jnp.float32)

    y = gaussian_blur_2d(x, radius=radius, sigma=sigma)
    y = jax.block_until_ready(y)

    # Reference: depthwise conv with the module's (unnormalized) 2-D Gaussian,
    # zero padding = radius (same math as F.conv2d in the PyTorch module).
    offs = np.linspace(-radius, radius, 2 * radius + 1)
    k2 = np.exp(-0.5 * (offs[:, None] ** 2 + offs[None, :] ** 2) / float(sigma) ** 2)
    k2 = jnp.asarray(k2.astype(np.float32))
    C = x.shape[1]
    k_depthwise = jnp.tile(k2[None, None], (C, 1, 1, 1))  # (C, 1, kh, kw)
    ref = jax.lax.conv_general_dilated(
        x, k_depthwise,
        window_strides=(1, 1),
        padding=((radius, radius), (radius, radius)),
        feature_group_count=C,
        dimension_numbers=("NCHW", "OIHW", "NCHW"),
    )
    assert y.shape == x.shape and y.dtype == x.dtype
    assert jnp.allclose(y, ref, atol=1e-4, rtol=1e-4)

    print("KERNEL_OK")
</pallas_src>

<mosaic_0001>
module attributes {stable_mosaic.version = 11 : i64} {
  func.func @_blur_kernel(%arg0: i32, %arg1: memref<7x16x16xf32, #tpu.memory_space<vmem>>, %arg2: memref<7x16x16xf32, #tpu.memory_space<vmem>>, %arg3: memref<1x32x128xf32, #tpu.memory_space<vmem>>, %arg4: memref<1x16x124xf32, #tpu.memory_space<vmem>>) attributes {dimension_semantics = [#tpu.dimension_semantics<parallel>], iteration_bounds = array<i64: 2>, scalar_prefetch = 0 : i64, scratch_operands = 2 : i64, tpu.core_type = #tpu.core_type<tc>, window_params = [{transform_indices = @transform_0, window_bounds = array<i64: 7, 16, 16>}, {transform_indices = @transform_1, window_bounds = array<i64: 7, 16, 16>}]} {
    %cst = arith.constant 0.000000e+00 : f32
    %0 = vector.broadcast %cst : f32 to vector<1x32x128xf32>
    %c0 = arith.constant 0 : index
    %c0_0 = arith.constant 0 : index
    %c0_1 = arith.constant 0 : index
    %1 = vector.load %arg3[%c0, %c0_0, %c0_1] : memref<1x32x128xf32, #tpu.memory_space<vmem>>, vector<1x32x128xf32>
    tpu.vector_store %arg3[%c0, %c0_0, %c0_1], %0 {strides = array<i32>} : memref<1x32x128xf32, #tpu.memory_space<vmem>>, vector<1x32x128xf32>,
    %c0_2 = arith.constant 0 : index
    %c0_3 = arith.constant 0 : index
    %c0_4 = arith.constant 0 : index
    %2 = vector.load %arg1[%c0_2, %c0_3, %c0_4] : memref<7x16x16xf32, #tpu.memory_space<vmem>>, vector<1x16x16xf32>
    %3 = vector.shape_cast %2 : vector<1x16x16xf32> to vector<16x16xf32>
    %c0_5 = arith.constant 0 : index
    %c8 = arith.constant 8 : index
    %c2 = arith.constant 2 : index
    %4 = vector.load %arg3[%c0_5, %c8, %c2] : memref<1x32x128xf32, #tpu.memory_space<vmem>>, vector<1x16x16xf32>
    %5 = vector.shape_cast %4 : vector<1x16x16xf32> to vector<16x16xf32>
    %6 = vector.shape_cast %3 : vector<16x16xf32> to vector<1x16x16xf32>
    tpu.vector_store %arg3[%c0_5, %c8, %c2], %6 {strides = array<i32>} : memref<1x32x128xf32, #tpu.memory_space<vmem>>, vector<1x16x16xf32>,
    %c1 = arith.constant 1 : index
    %c0_6 = arith.constant 0 : index
    %c0_7 = arith.constant 0 : index
    %7 = vector.load %arg1[%c1, %c0_6, %c0_7] : memref<7x16x16xf32, #tpu.memory_space<vmem>>, vector<1x16x16xf32>
    %8 = vector.shape_cast %7 : vector<1x16x16xf32> to vector<16x16xf32>
    %c0_8 = arith.constant 0 : index
    %c8_9 = arith.constant 8 : index
    %c20 = arith.constant 20 : index
    %9 = vector.load %arg3[%c0_8, %c8_9, %c20] : memref<1x32x128xf32, #tpu.memory_space<vmem>>, vector<1x16x16xf32>
    %10 = vector.shape_cast %9 : vector<1x16x16xf32> to vector<16x16xf32>
    %11 = vector.shape_cast %8 : vector<16x16xf32> to vector<1x16x16xf32>
    tpu.vector_store %arg3[%c0_8, %c8_9, %c20], %11 {strides = array<i32>} : memref<1x32x128xf32, #tpu.memory_space<vmem>>, vector<1x16x16xf32>,
    %c2_10 = arith.constant 2 : index
    %c0_11 = arith.constant 0 : index
    %c0_12 = arith.constant 0 : index
    %12 = vector.load %arg1[%c2_10, %c0_11, %c0_12] : memref<7x16x16xf32, #tpu.memory_space<vmem>>, vector<1x16x16xf32>
    %13 = vector.shape_cast %12 : vector<1x16x16xf32> to vector<16x16xf32>
    %c0_13 = arith.constant 0 : index
    %c8_14 = arith.constant 8 : index
    %c38 = arith.constant 38 : index
    %14 = vector.load %arg3[%c0_13, %c8_14, %c38] : memref<1x32x128xf32, #tpu.memory_space<vmem>>, vector<1x16x16xf32>
    %15 = vector.shape_cast %14 : vector<1x16x16xf32> to vector<16x16xf32>
    %16 = vector.shape_cast %13 : vector<16x16xf32> to vector<1x16x16xf32>
    tpu.vector_store %arg3[%c0_13, %c8_14, %c38], %16 {strides = array<i32>} : memref<1x32x128xf32, #tpu.memory_space<vmem>>, vector<1x16x16xf32>,
    %c3 = arith.constant 3 : index
    %c0_15 = arith.constant 0 : index
    %c0_16 = arith.constant 0 : index
    %17 = vector.load %arg1[%c3, %c0_15, %c0_16] : memref<7x16x16xf32, #tpu.memory_space<vmem>>, vector<1x16x16xf32>
    %18 = vector.shape_cast %17 : vector<1x16x16xf32> to vector<16x16xf32>
    %c0_17 = arith.constant 0 : index
    %c8_18 = arith.constant 8 : index
    %c56 = arith.constant 56 : index
    %19 = vector.load %arg3[%c0_17, %c8_18, %c56] : memref<1x32x128xf32, #tpu.memory_space<vmem>>, vector<1x16x16xf32>
    %20 = vector.shape_cast %19 : vector<1x16x16xf32> to vector<16x16xf32>
    %21 = vector.shape_cast %18 : vector<16x16xf32> to vector<1x16x16xf32>
    tpu.vector_store %arg3[%c0_17, %c8_18, %c56], %21 {strides = array<i32>} : memref<1x32x128xf32, #tpu.memory_space<vmem>>, vector<1x16x16xf32>,
    %c4 = arith.constant 4 : index
    %c0_19 = arith.constant 0 : index
    %c0_20 = arith.constant 0 : index
    %22 = vector.load %arg1[%c4, %c0_19, %c0_20] : memref<7x16x16xf32, #tpu.memory_space<vmem>>, vector<1x16x16xf32>
    %23 = vector.shape_cast %22 : vector<1x16x16xf32> to vector<16x16xf32>
    %c0_21 = arith.constant 0 : index
    %c8_22 = arith.constant 8 : index
    %c74 = arith.constant 74 : index
    %24 = vector.load %arg3[%c0_21, %c8_22, %c74] : memref<1x32x128xf32, #tpu.memory_space<vmem>>, vector<1x16x16xf32>
    %25 = vector.shape_cast %24 : vector<1x16x16xf32> to vector<16x16xf32>
    %26 = vector.shape_cast %23 : vector<16x16xf32> to vector<1x16x16xf32>
    tpu.vector_store %arg3[%c0_21, %c8_22, %c74], %26 {strides = array<i32>} : memref<1x32x128xf32, #tpu.memory_space<vmem>>, vector<1x16x16xf32>,
    %c5 = arith.constant 5 : index
    %c0_23 = arith.constant 0 : index
    %c0_24 = arith.constant 0 : index
    %27 = vector.load %arg1[%c5, %c0_23, %c0_24] : memref<7x16x16xf32, #tpu.memory_space<vmem>>, vector<1x16x16xf32>
    %28 = vector.shape_cast %27 : vector<1x16x16xf32> to vector<16x16xf32>
    %c0_25 = arith.constant 0 : index
    %c8_26 = arith.constant 8 : index
    %c92 = arith.constant 92 : index
    %29 = vector.load %arg3[%c0_25, %c8_26, %c92] : memref<1x32x128xf32, #tpu.memory_space<vmem>>, vector<1x16x16xf32>
    %30 = vector.shape_cast %29 : vector<1x16x16xf32> to vector<16x16xf32>
    %31 = vector.shape_cast %28 : vector<16x16xf32> to vector<1x16x16xf32>
    tpu.vector_store %arg3[%c0_25, %c8_26, %c92], %31 {strides = array<i32>} : memref<1x32x128xf32, #tpu.memory_space<vmem>>, vector<1x16x16xf32>,
    %c6 = arith.constant 6 : index
    %c0_27 = arith.constant 0 : index
    %c0_28 = arith.constant 0 : index
    %32 = vector.load %arg1[%c6, %c0_27, %c0_28] : memref<7x16x16xf32, #tpu.memory_space<vmem>>, vector<1x16x16xf32>
    %33 = vector.shape_cast %32 : vector<1x16x16xf32> to vector<16x16xf32>
    %c0_29 = arith.constant 0 : index
    %c8_30 = arith.constant 8 : index
    %c110 = arith.constant 110 : index
    %34 = vector.load %arg3[%c0_29, %c8_30, %c110] : memref<1x32x128xf32, #tpu.memory_space<vmem>>, vector<1x16x16xf32>
    %35 = vector.shape_cast %34 : vector<1x16x16xf32> to vector<16x16xf32>
    %36 = vector.shape_cast %33 : vector<16x16xf32> to vector<1x16x16xf32>
    tpu.vector_store %arg3[%c0_29, %c8_30, %c110], %36 {strides = array<i32>} : memref<1x32x128xf32, #tpu.memory_space<vmem>>, vector<1x16x16xf32>,
    %c0_31 = arith.constant 0 : index
    %c6_32 = arith.constant 6 : index
    %c2_33 = arith.constant 2 : index
    %37 = vector.load %arg3[%c0_31, %c6_32, %c2_33] : memref<1x32x128xf32, #tpu.memory_space<vmem>>, vector<1x20x124xf32>
    %cst_34 = arith.constant 1.000000e+00 : f32
    %38 = vector.broadcast %cst_34 : f32 to vector<1x20x124xf32>
    %39 = arith.mulf %38, %37 : vector<1x20x124xf32>
    %c0_35 = arith.constant 0 : index
    %c6_36 = arith.constant 6 : index
    %c3_37 = arith.constant 3 : index
    %40 = vector.load %arg3[%c0_35, %c6_36, %c3_37] : memref<1x32x128xf32, #tpu.memory_space<vmem>>, vector<1x20x124xf32>
    %c0_38 = arith.constant 0 : index
    %c6_39 = arith.constant 6 : index
    %c1_40 = arith.constant 1 : index
    %41 = vector.load %arg3[%c0_38, %c6_39, %c1_40] : memref<1x32x128xf32, #tpu.memory_space<vmem>>, vector<1x20x124xf32>
    %42 = arith.addf %40, %41 : vector<1x20x124xf32>
    %cst_41 = arith.constant 0.606530666 : f32
    %43 = vector.broadcast %cst_41 : f32 to vector<1x20x124xf32>
    %44 = arith.mulf %43, %42 : vector<1x20x124xf32>
    %45 = arith.addf %39, %44 : vector<1x20x124xf32>
    %c0_42 = arith.constant 0 : index
    %c6_43 = arith.constant 6 : index
    %c4_44 = arith.constant 4 : index
    %46 = vector.load %arg3[%c0_42, %c6_43, %c4_44] : memref<1x32x128xf32, #tpu.memory_space<vmem>>, vector<1x20x124xf32>
    %c0_45 = arith.constant 0 : index
    %c6_46 = arith.constant 6 : index
    %c0_47 = arith.constant 0 : index
    %47 = vector.load %arg3[%c0_45, %c6_46, %c0_47] : memref<1x32x128xf32, #tpu.memory_space<vmem>>, vector<1x20x124xf32>
    %48 = arith.addf %46, %47 : vector<1x20x124xf32>
    %cst_48 = arith.constant 0.135335281 : f32
    %49 = vector.broadcast %cst_48 : f32 to vector<1x20x124xf32>
    %50 = arith.mulf %49, %48 : vector<1x20x124xf32>
    %51 = arith.addf %45, %50 : vector<1x20x124xf32>
    %52 = vector.extract_strided_slice %51 {offsets = [0, 2, 0], sizes = [1, 16, 124], strides = [1, 1, 1]} : vector<1x20x124xf32> to vector<1x16x124xf32>
    %cst_49 = arith.constant 1.000000e+00 : f32
    %53 = vector.broadcast %cst_49 : f32 to vector<1x16x124xf32>
    %54 = arith.mulf %53, %52 : vector<1x16x124xf32>
    %55 = vector.extract_strided_slice %51 {offsets = [0, 3, 0], sizes = [1, 16, 124], strides = [1, 1, 1]} : vector<1x20x124xf32> to vector<1x16x124xf32>
    %56 = vector.extract_strided_slice %51 {offsets = [0, 1, 0], sizes = [1, 16, 124], strides = [1, 1, 1]} : vector<1x20x124xf32> to vector<1x16x124xf32>
    %57 = arith.addf %55, %56 : vector<1x16x124xf32>
    %cst_50 = arith.constant 0.606530666 : f32
    %58 = vector.broadcast %cst_50 : f32 to vector<1x16x124xf32>
    %59 = arith.mulf %58, %57 : vector<1x16x124xf32>
    %60 = arith.addf %54, %59 : vector<1x16x124xf32>
    %61 = vector.extract_strided_slice %51 {offsets = [0, 4, 0], sizes = [1, 16, 124], strides = [1, 1, 1]} : vector<1x20x124xf32> to vector<1x16x124xf32>
    %62 = vector.extract_strided_slice %51 {offsets = [0, 0, 0], sizes = [1, 16, 124], strides = [1, 1, 1]} : vector<1x20x124xf32> to vector<1x16x124xf32>
    %63 = arith.addf %61, %62 : vector<1x16x124xf32>
    %cst_51 = arith.constant 0.135335281 : f32
    %64 = vector.broadcast %cst_51 : f32 to vector<1x16x124xf32>
    %65 = arith.mulf %64, %63 : vector<1x16x124xf32>
    %66 = arith.addf %60, %65 : vector<1x16x124xf32>
    %c0_52 = arith.constant 0 : index
    %c0_53 = arith.constant 0 : index
    %c0_54 = arith.constant 0 : index
    %67 = vector.load %arg4[%c0_52, %c0_53, %c0_54] : memref<1x16x124xf32, #tpu.memory_space<vmem>>, vector<1x16x124xf32>
    tpu.vector_store %arg4[%c0_52, %c0_53, %c0_54], %66 {strides = array<i32>} : memref<1x16x124xf32, #tpu.memory_space<vmem>>, vector<1x16x124xf32>,
    %c0_55 = arith.constant 0 : index
    %c0_56 = arith.constant 0 : index
    %c0_57 = arith.constant 0 : index
    %68 = vector.load %arg4[%c0_55, %c0_56, %c0_57] : memref<1x16x124xf32, #tpu.memory_space<vmem>>, vector<1x16x16xf32>
    %69 = vector.shape_cast %68 : vector<1x16x16xf32> to vector<16x16xf32>
    %c0_58 = arith.constant 0 : index
    %c0_59 = arith.constant 0 : index
    %c0_60 = arith.constant 0 : index
    %70 = vector.load %arg2[%c0_58, %c0_59, %c0_60] : memref<7x16x16xf32, #tpu.memory_space<vmem>>, vector<1x16x16xf32>
    %71 = vector.shape_cast %70 : vector<1x16x16xf32> to vector<16x16xf32>
    %72 = vector.shape_cast %69 : vector<16x16xf32> to vector<1x16x16xf32>
    tpu.vector_store %arg2[%c0_58, %c0_59, %c0_60], %72 {strides = array<i32>} : memref<7x16x16xf32, #tpu.memory_space<vmem>>, vector<1x16x16xf32>,
    %c0_61 = arith.constant 0 : index
    %c0_62 = arith.constant 0 : index
    %c18 = arith.constant 18 : index
    %73 = vector.load %arg4[%c0_61, %c0_62, %c18] : memref<1x16x124xf32, #tpu.memory_space<vmem>>, vector<1x16x16xf32>
    %74 = vector.shape_cast %73 : vector<1x16x16xf32> to vector<16x16xf32>
    %c1_63 = arith.constant 1 : index
    %c0_64 = arith.constant 0 : index
    %c0_65 = arith.constant 0 : index
    %75 = vector.load %arg2[%c1_63, %c0_64, %c0_65] : memref<7x16x16xf32, #tpu.memory_space<vmem>>, vector<1x16x16xf32>
    %76 = vector.shape_cast %75 : vector<1x16x16xf32> to vector<16x16xf32>
    %77 = vector.shape_cast %74 : vector<16x16xf32> to vector<1x16x16xf32>
    tpu.vector_store %arg2[%c1_63, %c0_64, %c0_65], %77 {strides = array<i32>} : memref<7x16x16xf32, #tpu.memory_space<vmem>>, vector<1x16x16xf32>,
    %c0_66 = arith.constant 0 : index
    %c0_67 = arith.constant 0 : index
    %c36 = arith.constant 36 : index
    %78 = vector.load %arg4[%c0_66, %c0_67, %c36] : memref<1x16x124xf32, #tpu.memory_space<vmem>>, vector<1x16x16xf32>
    %79 = vector.shape_cast %78 : vector<1x16x16xf32> to vector<16x16xf32>
    %c2_68 = arith.constant 2 : index
    %c0_69 = arith.constant 0 : index
    %c0_70 = arith.constant 0 : index
    %80 = vector.load %arg2[%c2_68, %c0_69, %c0_70] : memref<7x16x16xf32, #tpu.memory_space<vmem>>, vector<1x16x16xf32>
    %81 = vector.shape_cast %80 : vector<1x16x16xf32> to vector<16x16xf32>
    %82 = vector.shape_cast %79 : vector<16x16xf32> to vector<1x16x16xf32>
    tpu.vector_store %arg2[%c2_68, %c0_69, %c0_70], %82 {strides = array<i32>} : memref<7x16x16xf32, #tpu.memory_space<vmem>>, vector<1x16x16xf32>,
    %c0_71 = arith.constant 0 : index
    %c0_72 = arith.constant 0 : index
    %c54 = arith.constant 54 : index
    %83 = vector.load %arg4[%c0_71, %c0_72, %c54] : memref<1x16x124xf32, #tpu.memory_space<vmem>>, vector<1x16x16xf32>
    %84 = vector.shape_cast %83 : vector<1x16x16xf32> to vector<16x16xf32>
    %c3_73 = arith.constant 3 : index
    %c0_74 = arith.constant 0 : index
    %c0_75 = arith.constant 0 : index
    %85 = vector.load %arg2[%c3_73, %c0_74, %c0_75] : memref<7x16x16xf32, #tpu.memory_space<vmem>>, vector<1x16x16xf32>
    %86 = vector.shape_cast %85 : vector<1x16x16xf32> to vector<16x16xf32>
    %87 = vector.shape_cast %84 : vector<16x16xf32> to vector<1x16x16xf32>
    tpu.vector_store %arg2[%c3_73, %c0_74, %c0_75], %87 {strides = array<i32>} : memref<7x16x16xf32, #tpu.memory_space<vmem>>, vector<1x16x16xf32>,
    %c0_76 = arith.constant 0 : index
    %c0_77 = arith.constant 0 : index
    %c72 = arith.constant 72 : index
    %88 = vector.load %arg4[%c0_76, %c0_77, %c72] : memref<1x16x124xf32, #tpu.memory_space<vmem>>, vector<1x16x16xf32>
    %89 = vector.shape_cast %88 : vector<1x16x16xf32> to vector<16x16xf32>
    %c4_78 = arith.constant 4 : index
    %c0_79 = arith.constant 0 : index
    %c0_80 = arith.constant 0 : index
    %90 = vector.load %arg2[%c4_78, %c0_79, %c0_80] : memref<7x16x16xf32, #tpu.memory_space<vmem>>, vector<1x16x16xf32>
    %91 = vector.shape_cast %90 : vector<1x16x16xf32> to vector<16x16xf32>
    %92 = vector.shape_cast %89 : vector<16x16xf32> to vector<1x16x16xf32>
    tpu.vector_store %arg2[%c4_78, %c0_79, %c0_80], %92 {strides = array<i32>} : memref<7x16x16xf32, #tpu.memory_space<vmem>>, vector<1x16x16xf32>,
    %c0_81 = arith.constant 0 : index
    %c0_82 = arith.constant 0 : index
    %c90 = arith.constant 90 : index
    %93 = vector.load %arg4[%c0_81, %c0_82, %c90] : memref<1x16x124xf32, #tpu.memory_space<vmem>>, vector<1x16x16xf32>
    %94 = vector.shape_cast %93 : vector<1x16x16xf32> to vector<16x16xf32>
    %c5_83 = arith.constant 5 : index
    %c0_84 = arith.constant 0 : index
    %c0_85 = arith.constant 0 : index
    %95 = vector.load %arg2[%c5_83, %c0_84, %c0_85] : memref<7x16x16xf32, #tpu.memory_space<vmem>>, vector<1x16x16xf32>
    %96 = vector.shape_cast %95 : vector<1x16x16xf32> to vector<16x16xf32>
    %97 = vector.shape_cast %94 : vector<16x16xf32> to vector<1x16x16xf32>
    tpu.vector_store %arg2[%c5_83, %c0_84, %c0_85], %97 {strides = array<i32>} : memref<7x16x16xf32, #tpu.memory_space<vmem>>, vector<1x16x16xf32>,
    %c0_86 = arith.constant 0 : index
    %c0_87 = arith.constant 0 : index
    %c108 = arith.constant 108 : index
    %98 = vector.load %arg4[%c0_86, %c0_87, %c108] : memref<1x16x124xf32, #tpu.memory_space<vmem>>, vector<1x16x16xf32>
    %99 = vector.shape_cast %98 : vector<1x16x16xf32> to vector<16x16xf32>
    %c6_88 = arith.constant 6 : index
    %c0_89 = arith.constant 0 : index
    %c0_90 = arith.constant 0 : index
    %100 = vector.load %arg2[%c6_88, %c0_89, %c0_90] : memref<7x16x16xf32, #tpu.memory_space<vmem>>, vector<1x16x16xf32>
    %101 = vector.shape_cast %100 : vector<1x16x16xf32> to vector<16x16xf32>
    %102 = vector.shape_cast %99 : vector<16x16xf32> to vector<1x16x16xf32>
    tpu.vector_store %arg2[%c6_88, %c0_89, %c0_90], %102 {strides = array<i32>} : memref<7x16x16xf32, #tpu.memory_space<vmem>>, vector<1x16x16xf32>,
    return
  }
  func.func @transform_0(%arg0: i32) -> (i32, i32, i32) {
    %c0_i32 = arith.constant 0 : i32
    %c0_i32_0 = arith.constant 0 : i32
    %c0_i32_1 = arith.constant 0 : i32
    return %arg0, %c0_i32, %c0_i32_0 : i32, i32, i32
  }
  func.func @transform_1(%arg0: i32) -> (i32, i32, i32) {
    %c0_i32 = arith.constant 0 : i32
    %c0_i32_0 = arith.constant 0 : i32
    %c0_i32_1 = arith.constant 0 : i32
    return %arg0, %c0_i32, %c0_i32_0 : i32, i32, i32
  }
}

</mosaic_0001>

<llo_original>
// kernel: tpu_custom_call.1
$region0: #{tpu_custom_call.1}
  #allocation0 [shape = 'u32[]', space=smem, size = 0x4, offset = 0x4, fixed_abs, tag = 'smem constant byte address 0x4 - core index']
  #allocation1 [shape = 'u32[144,128]{1,0:T(1,128)}', space=vmem, size = 0x12000, scoped, tag = 'internal scratch']
  #allocation2 [shape = 'f32[1,32,128]{2,1,0:T(8,128)}', space=vmem, size = 0x4000, scoped, tag = 'scratch operand']
  #allocation3 [shape = 'f32[1,16,124]{2,1,0:T(8,128)}', space=vmem, size = 0x2000, scoped, tag = 'scratch operand']
  %s0 = inlined_call_operand.hbm [shape: f32[8,16,16], index: 0, kind: input, shape index: {}]
  %s1 = inlined_call_operand.hbm [shape: f32[8,16,16], index: 1, kind: output, shape index: {}]
  %s2 = sld [smem:[#allocation0]]
  $region41: #{tpu_custom_call.1} parent=0
    _
  %s4 = ssub.s32 1, %s2
  %s5 = scalar_select 0, %s4, %s2
  $region1: #{tpu_custom_call.1} parent=0
    #allocation4 [shape = 'u8[114688]{0}', space=vmem, size = 0x1c000, scoped, tag = 'input window, operand 0']
    #allocation5 [shape = 's32[2]{0}', space=sflag, size = 0x8, scoped, tag = 'scoped memory for tpu_custom_call.1']
    #allocation6 [shape = 's32[2]{0}', space=sflag, size = 0x8, scoped, tag = 'scoped memory for tpu_custom_call.1']
    #allocation7 [shape = 'u8[114688]{0}', space=vmem, size = 0x1c000, scoped, tag = 'output window, operand 0']
    %6 = vsyncpa [#allocation5], 0
    %s7 = scalar_lea.sflag [#allocation5], 1
    %8 = vsyncpa %s7, 0
    %9 = vsyncpa [#allocation6], 0
    %s10 = scalar_lea.sflag [#allocation6], 1
    %11 = vsyncpa %s10, 0
    loop: start=0, step=1, limit=4
    $region2: #{tpu_custom_call.1} parent=1 // loop_pre_header
      _
    $region3: #{tpu_custom_call.1} parent=1 // loop_header
      %s13 = sphi 0, %s17
      %p14 = scmp.ge.s32.totalorder %s13, 4
      %s23 = sphi 0, %s25
      %s26 = sphi 0, %s23
      %s27 = sphi 0, %s26
      %s43 = sphi 0, %s27
      %s49 = sphi 0, %s51
      %s52 = sphi 0, %s49
      %s53 = sphi 0, %s52
      %s69 = sphi 0, %s53
    $region4: #{tpu_custom_call.1} parent=1 // loop_header_branch
      %16 = sbr.rel (%p14) target = $region8
    $region5: #{tpu_custom_call.1} parent=1 // loop_body
      %s18 = ssub.s32 %s13, 1
      %s19 = ssub.s32 %s13, 2
      %s20 = sadd.s32 %s13, 1
      %s21 = ssub.s32 %s13, %s20
      %p22 = scmp.eq.s32.totalorder %s21, 0
      %s24 = sadd.s32 %s23, 1
      %s25 = scalar_select %p22, %s23, %s24
      %p28 = pneg %p22
      %p29 = scmp.eq.s32.totalorder %s13, 1
      %p30 = por %p28, %p29
      %p31 = scmp.ne.s32.totalorder %s23, %s26
      %p32 = scmp.eq.s32.totalorder %s13, 0
      %p33 = por %p31, %p32
      %p34 = scmp.ne.s32.totalorder %s23, %s26
      %p35 = scmp.eq.s32.totalorder %s18, 1
      %p36 = por %p34, %p35
      %p37 = scmp.ne.s32.totalorder %s26, %s27
      %p38 = scmp.eq.s32.totalorder %s18, 0
      %p39 = por %p37, %p38
      %p40 = scmp.ne.s32.totalorder %s26, %s27
      %p41 = scmp.eq.s32.totalorder %s19, 1
      %p42 = por %p40, %p41
      %p44 = scmp.ne.s32.totalorder %s27, %s43
      %p45 = scmp.eq.s32.totalorder %s19, 0
      %p46 = por %p44, %p45
      %s47 = ssub.s32 %s13, %s20
      %p48 = scmp.eq.s32.totalorder %s47, 0
      %s50 = sadd.s32 %s49, 1
      %s51 = scalar_select %p48, %s49, %s50
      %p54 = pneg %p48
      %p55 = scmp.eq.s32.totalorder %s13, 1
      %p56 = por %p54, %p55
      %p57 = scmp.ne.s32.totalorder %s49, %s52
      %p58 = scmp.eq.s32.totalorder %s13, 0
      %p59 = por %p57, %p58
      %p60 = scmp.ne.s32.totalorder %s49, %s52
      %p61 = scmp.eq.s32.totalorder %s18, 1
      %p62 = por %p60, %p61
      %p63 = scmp.ne.s32.totalorder %s52, %s53
      %p64 = scmp.eq.s32.totalorder %s18, 0
      %p65 = por %p63, %p64
      %p66 = scmp.ne.s32.totalorder %s52, %s53
      %p67 = scmp.eq.s32.totalorder %s19, 1
      %p68 = por %p66, %p67
      %p70 = scmp.ne.s32.totalorder %s53, %s69
      %p71 = scmp.eq.s32.totalorder %s19, 0
      %p72 = por %p70, %p71
      %p73 = scmp.le.s32.totalorder 1, %s13
      %p74 = scmp.lt.s32.totalorder %s13, 3
      %p75 = pnand %p73, %p74
      %p76 = pneg %p75
      // Predicated region
      $region9: #{tpu_custom_call.1} parent=5 // pred_check
        _
      $region10: #{tpu_custom_call.1} parent=5 // pred_check_branch
        %78 = sbr.rel (%p75) target = $region12
      $region11: #{tpu_custom_call.1} parent=5 // pred_region
        %s79 = ssub.s32 %s13, 1
      $region12: #{tpu_custom_call.1} parent=5 // pred_fallthru
        _
      %p80 = scmp.lt.s32.totalorder %s13, 2
      // Predicated region
      $region13: #{tpu_custom_call.1} parent=5 // pred_check
        %p81 = pneg %p80
      $region14: #{tpu_custom_call.1} parent=5 // pred_check_branch
        %83 = sbr.rel (%p81) target = $region16
      $region15: #{tpu_custom_call.1} parent=5 // pred_region
        // Predicated region
        $region17: #{tpu_custom_call.1} parent=15 // pred_check
          %p84 = pneg %p33
        $region18: #{tpu_custom_call.1} parent=15 // pred_check_branch
          %86 = sbr.rel (%p84) target = $region20
        $region19: #{tpu_custom_call.1} parent=15 // pred_region
          %s87 = sand.u32 %s23, 1
          %s88 = scalar_lea.sflag [#allocation5], %s87
          %s89 = sand.u32 %s23, 1
          %s90 = smul.addr %s89, 112
          %s91 = scalar_lea.vmem [#allocation4], %s90
          %s92 = smul.u32 7, %s13
          %s93 = ssub.s32 8, %s92
          %p94 = scmp.lt.s32.totalorder %s93, 7
          %s95 = scalar_select %p94, %s93, 7
          %s96 = smul.u32 128, %s95
          %s97 = smul.u32 %s96, 2
          %s99 = ssub.s32 1792, %s97
          %100 = vsyncadd %s88, %s99
          %p101 = scmp.ne.s32.totalorder 0, %s97
          %s102 = smul.addr %s92, 2
          %s103 = smul.addr %s102, 128
          %s104 = scalar_lea.hbm %s0, %s103
          %s105 = smul.u32 %s95, 2
          %s106 = smul.u32 8, %s105
          %s107 = sshll.u32 %s91, 4
          %s108 = int_to_ptr.vmem [resolvable:$true] %s107
          %s109 = sshll.u32 %s106, 4
          %113 = dma.hbm_to_vmem [thread:$0]  (%p101), %s104, %s109, %s108, %s88, 128, 128, 8
        $region20: #{tpu_custom_call.1} parent=15 // pred_fallthru
          _
      $region16: #{tpu_custom_call.1} parent=5 // pred_fallthru
        _
      %p114 = scmp.le.s32.totalorder 1, %s13
      %p115 = scmp.lt.s32.totalorder %s13, 3
      %p116 = pnand %p114, %p115
      %p117 = pneg %p116
      // Predicated region
      $region21: #{tpu_custom_call.1} parent=5 // pred_check
        _
      $region22: #{tpu_custom_call.1} parent=5 // pred_check_branch
        %119 = sbr.rel (%p116) target = $region24
      $region23: #{tpu_custom_call.1} parent=5 // pred_region
        %s120 = ssub.s32 %s13, 1
        %s121 = sand.u32 %s26, 1
        %s122 = scalar_lea.sflag [#allocation5], %s121
        %s123 = sand.u32 %s26, 1
        %s124 = smul.addr %s123, 112
        %s125 = scalar_lea.vmem [#allocation4], %s124
        // Predicated region
        $region25: #{tpu_custom_call.1} parent=23 // pred_check
          %p126 = pneg %p39
        $region26: #{tpu_custom_call.1} parent=23 // pred_check_branch
          %128 = sbr.rel (%p126) target = $region28
        $region27: #{tpu_custom_call.1} parent=23 // pred_region
          %129 = dma.done %s122, 1792
        $region28: #{tpu_custom_call.1} parent=23 // pred_fallthru
          _
        %s130 = sand.u32 %s26, 1
        %s131 = scalar_lea.sflag [#allocation5], %s130
        %s132 = sand.u32 %s26, 1
        %s133 = smul.addr %s132, 112
        %s134 = scalar_lea.vmem [#allocation4], %s133
        %p135 = pneg %p39
        %p136 = pneg %p36
        %p137 = pneg %p65
        %p138 = pneg %p62
        %s139 = sand.u32 %s52, 1
        %s140 = scalar_lea.sflag [#allocation6], %s139
        %s141 = sand.u32 %s52, 1
        %s142 = smul.addr %s141, 112
        %s143 = scalar_lea.vmem [#allocation7], %s142
        %s144 = smul.u32 7, %s18
        %s145 = ssub.s32 8, %s144
        %p146 = scmp.lt.s32.totalorder %s145, 7
        %s147 = scalar_select %p146, %s145, 7
        %s148 = smul.u32 128, %s147
        %s149 = smul.u32 %s148, 2
        %s150 = smul.u32 7, %s18
        %s151 = ssub.s32 8, %s150
        %p152 = scmp.lt.s32.totalorder %s151, 7
        %s153 = scalar_select %p152, %s151, 7
        %s154 = smul.u32 128, %s153
        %s155 = smul.u32 %s154, 2
        %156 = vst [vmem:[#allocation2] sm:$0xff] 0.0
        %157 = vst [vmem:[#allocation2 + $0x8] sm:$0xff] 0.0
        %158 = vst [vmem:[#allocation2 + $0x10] sm:$0xff] 0.0
        %159 = vst [vmem:[#allocation2 + $0x18] sm:$0xff] 0.0
        %v160 = vld [vmem:[%s125] sm:$0xff]
        %v161 = vld [vmem:[%s125 + $0x8] sm:$0xff]
        %164 = vrot.lane.b32.xlu0 %v160, 2
        %v165 = vpop.permute.xlu0 %164
        %166 = vrot.lane.b32.xlu0 %v161, 2
        %v167 = vpop.permute.xlu0 %166
        %vm170 = vcmask 146448
        %171 = vst.msk [vmem:[#allocation2 + $0x8] sm:$0xff] %vm170, %v165
        %172 = vst.msk [vmem:[#allocation2 + $0x10] sm:$0xff] %vm170, %v167
        %s173 = scalar_lea.vmem %s125, 16 [#allocation4]
        %v174 = vld [vmem:[%s173] sm:$0xff]
        %v175 = vld [vmem:[%s173 + $0x8] sm:$0xff]
        %178 = vrot.lane.b32.xlu0 %v174, 20
        %v179 = vpop.permute.xlu0 %178
        %180 = vrot.lane.b32.xlu0 %v175, 20
        %v181 = vpop.permute.xlu0 %180
        %vm184 = vcmask 294048
        %185 = vst.msk [vmem:[#allocation2 + $0x8] sm:$0xff] %vm184, %v179
        %186 = vst.msk [vmem:[#allocation2 + $0x10] sm:$0xff] %vm184, %v181
        %s187 = scalar_lea.vmem %s125, 32 [#allocation4]
        %v188 = vld [vmem:[%s187] sm:$0xff]
        %v189 = vld [vmem:[%s187 + $0x8] sm:$0xff]
        %192 = vrot.lane.b32.xlu0 %v188, 38
        %v193 = vpop.permute.xlu0 %192
        %194 = vrot.lane.b32.xlu0 %v189, 38
        %v195 = vpop.permute.xlu0 %194
        %vm198 = vcmask 441648
        %199 = vst.msk [vmem:[#allocation2 + $0x8] sm:$0xff] %vm198, %v193
        %200 = vst.msk [vmem:[#allocation2 + $0x10] sm:$0xff] %vm198, %v195
        %s201 = scalar_lea.vmem %s125, 48 [#allocation4]
        %v202 = vld [vmem:[%s201] sm:$0xff]
        %v203 = vld [vmem:[%s201 + $0x8] sm:$0xff]
        %206 = vrot.lane.b32.xlu0 %v202, 56
        %v207 = vpop.permute.xlu0 %206
        %208 = vrot.lane.b32.xlu0 %v203, 56
        %v209 = vpop.permute.xlu0 %208
        %vm212 = vcmask 589248
        %213 = vst.msk [vmem:[#allocation2 + $0x8] sm:$0xff] %vm212, %v207
        %214 = vst.msk [vmem:[#allocation2 + $0x10] sm:$0xff] %vm212, %v209
        %s215 = scalar_lea.vmem %s125, 64 [#allocation4]
        %v216 = vld [vmem:[%s215] sm:$0xff]
        %v217 = vld [vmem:[%s215 + $0x8] sm:$0xff]
        %220 = vrot.lane.b32.xlu0 %v216, 74
        %v221 = vpop.permute.xlu0 %220
        %222 = vrot.lane.b32.xlu0 %v217, 74
        %v223 = vpop.permute.xlu0 %222
        %vm226 = vcmask 736848
        %227 = vst.msk [vmem:[#allocation2 + $0x8] sm:$0xff] %vm226, %v221
        %228 = vst.msk [vmem:[#allocation2 + $0x10] sm:$0xff] %vm226, %v223
        %s229 = scalar_lea.vmem %s125, 80 [#allocation4]
        %v230 = vld [vmem:[%s229] sm:$0xff]
        %v231 = vld [vmem:[%s229 + $0x8] sm:$0xff]
        %234 = vrot.lane.b32.xlu0 %v230, 92
        %v235 = vpop.permute.xlu0 %234
        %236 = vrot.lane.b32.xlu0 %v231, 92
        %v237 = vpop.permute.xlu0 %236
        %vm240 = vcmask 884448
        %241 = vst.msk [vmem:[#allocation2 + $0x8] sm:$0xff] %vm240, %v235
        %242 = vst.msk [vmem:[#allocation2 + $0x10] sm:$0xff] %vm240, %v237
        %s243 = scalar_lea.vmem %s125, 96 [#allocation4]
        %v244 = vld [vmem:[%s243] sm:$0xff]
        %v245 = vld [vmem:[%s243 + $0x8] sm:$0xff]
        %248 = vrot.lane.b32.xlu0 %v244, 110
        %v249 = vpop.permute.xlu0 %248
        %250 = vrot.lane.b32.xlu0 %v245, 110
        %v251 = vpop.permute.xlu0 %250
        %vm254 = vcmask 1032048
        %255 = vst.msk [vmem:[#allocation2 + $0x8] sm:$0xff] %vm254, %v249
        %256 = vst.msk [vmem:[#allocation2 + $0x10] sm:$0xff] %vm254, %v251
        %v257 = vld [vmem:[#allocation2 + $0x6] sm:$0xff]
        %v258 = vld [vmem:[#allocation2 + $0xe] sm:$0xff]
        %v259 = vld [vmem:[#allocation2 + $0x16] sm:$0xf]
        %263 = vrot.lane.b32.xlu0 %v257, 2
        %v264 = vpop.permute.xlu0 %263
        %265 = vrot.lane.b32.xlu0 %v258, 2
        %v266 = vpop.permute.xlu0 %265
        %267 = vrot.lane.b32.xlu0 %v259, 2
        %v268 = vpop.permute.xlu0 %267
        %v272 = vadd.f32 %v257, %v264
        %v273 = vadd.f32 %v258, %v266
        %v274 = vadd.f32 %v259, %v268
        %v275 = vmul.f32 %v272, 0.60653067
        %v276 = vmul.f32 %v273, 0.60653067
        %v277 = vmul.f32 %v274, 0.60653067
        %281 = vrot.lane.b32.xlu0 %v275, 127
        %v282 = vpop.permute.xlu0 %281
        %283 = vrot.lane.b32.xlu0 %v276, 127
        %v284 = vpop.permute.xlu0 %283
        %285 = vrot.lane.b32.xlu0 %v277, 127
        %v286 = vpop.permute.xlu0 %285
        %v290 = vadd.f32 %v257, %v282
        %v291 = vadd.f32 %v258, %v284
        %v292 = vadd.f32 %v259, %v286
        %293 = vrot.lane.b32.xlu0 %v257, 4
        %v294 = vpop.permute.xlu0 %293
        %295 = vrot.lane.b32.xlu0 %v258, 4
        %v296 = vpop.permute.xlu0 %295
        %297 = vrot.lane.b32.xlu0 %v259, 4
        %v298 = vpop.permute.xlu0 %297
        %v302 = vadd.f32 %v257, %v294
        %v303 = vadd.f32 %v258, %v296
        %v304 = vadd.f32 %v259, %v298
        %v305 = vmul.f32 %v302, 0.13533528
        %v306 = vmul.f32 %v303, 0.13533528
        %v307 = vmul.f32 %v304, 0.13533528
        %311 = vrot.lane.b32.xlu0 %v305, 126
        %v312 = vpop.permute.xlu0 %311
        %313 = vrot.lane.b32.xlu0 %v306, 126
        %v314 = vpop.permute.xlu0 %313
        %315 = vrot.lane.b32.xlu0 %v307, 126
        %v316 = vpop.permute.xlu0 %315
        %v320 = vadd.f32 %v290, %v312
        %v321 = vadd.f32 %v291, %v314
        %v322 = vadd.f32 %v292, %v316
        %vm326 = vcmask 1041408
        %v327 = vrot.slane %v320, 6
        %v328 = vrot.slane %v321, 6
        %v329 = vsel %vm326, %v327, %v328
        %v330 = vrot.slane %v322, 6
        %v331 = vsel %vm326, %v328, %v330
        %v335 = vadd.f32 %v320, %v327
        %v336 = vadd.f32 %v321, %v329
        %v337 = vadd.f32 %v322, %v331
        %v338 = vmul.f32 %v335, 0.60653067
        %v339 = vmul.f32 %v336, 0.60653067
        %v340 = vmul.f32 %v337, 0.60653067
        %vm344 = vcmask 1046528
        %v345 = vrot.slane %v338, 1
        %v346 = vrot.slane %v339, 1
        %v347 = vsel %vm344, %v345, %v346
        %v348 = vrot.slane %v340, 1
        %v349 = vsel %vm344, %v346, %v348
        %v353 = vadd.f32 %v320, %v347
        %v354 = vadd.f32 %v321, %v349
        %v355 = vadd.f32 %v322, %v348
        %vm356 = vcmask 1043456
        %v357 = vrot.slane %v320, 4
        %v358 = vrot.slane %v321, 4
        %v359 = vsel %vm356, %v357, %v358
        %v363 = vadd.f32 %v320, %v357
        %v364 = vadd.f32 %v321, %v359
        %v365 = vadd.f32 %v322, %v358
        %v366 = vmul.f32 %v363, 0.13533528
        %v367 = vmul.f32 %v364, 0.13533528
        %v368 = vmul.f32 %v365, 0.13533528
        %vm372 = vcmask 1045504
        %v373 = vrot.slane %v366, 2
        %v374 = vrot.slane %v367, 2
        %v375 = vsel %vm372, %v373, %v374
        %v376 = vrot.slane %v368, 2
        %v377 = vsel %vm372, %v374, %v376
        %v381 = vadd.f32 %v353, %v375
        %v382 = vadd.f32 %v354, %v377
        %v383 = vadd.f32 %v355, %v376
        %387 = vrot.lane.b32.xlu0 %v381, 126
        %v388 = vpop.permute.xlu0 %387
        %389 = vrot.lane.b32.xlu0 %v382, 126
        %v390 = vpop.permute.xlu0 %389
        %391 = vrot.lane.b32.xlu0 %v383, 126
        %v392 = vpop.permute.xlu0 %391
        %vm396 = vcmask 1014786
        %397 = vst.msk [vmem:[#allocation3 - $0x2] sm:$0xfc] %vm396, %v388
        %vm398 = vcmask 1014784
        %399 = vst.msk [vmem:[#allocation3 + $0x6] sm:$0xff] %vm398, %v390
        %vm400 = vcmask 1008640
        %401 = vst.msk [vmem:[#allocation3 + $0xe] sm:$0x3] %vm400, %v392
        %v402 = vld [vmem:[#allocation3] sm:$0xff]
        %v403 = vld [vmem:[#allocation3 + $0x8] sm:$0xff]
        %vm404 = vcmask 130048
        %405 = vst.msk [vmem:[%s143] sm:$0xff] %vm404, %v402
        %406 = vst.msk [vmem:[%s143 + $0x8] sm:$0xff] %vm404, %v403
        %v407 = vld [vmem:[#allocation3] sm:$0xff]
        %v408 = vld [vmem:[#allocation3 + $0x8] sm:$0xff]
        %411 = vrot.lane.b32.xlu0 %v407, 110
        %v412 = vpop.permute.xlu0 %411
        %413 = vrot.lane.b32.xlu0 %v408, 110
        %v414 = vpop.permute.xlu0 %413
        %s417 = scalar_lea.vmem %s143, 16 [#allocation7]
        %418 = vst.msk [vmem:[%s417] sm:$0xff] %vm404, %v412
        %419 = vst.msk [vmem:[%s417 + $0x8] sm:$0xff] %vm404, %v414
        %v420 = vld [vmem:[#allocation3] sm:$0xff]
        %v421 = vld [vmem:[#allocation3 + $0x8] sm:$0xff]
        %424 = vrot.lane.b32.xlu0 %v420, 92
        %v425 = vpop.permute.xlu0 %424
        %426 = vrot.lane.b32.xlu0 %v421, 92
        %v427 = vpop.permute.xlu0 %426
        %s430 = scalar_lea.vmem %s143, 32 [#allocation7]
        %431 = vst.msk [vmem:[%s430] sm:$0xff] %vm404, %v425
        %432 = vst.msk [vmem:[%s430 + $0x8] sm:$0xff] %vm404, %v427
        %v433 = vld [vmem:[#allocation3] sm:$0xff]
        %v434 = vld [vmem:[#allocation3 + $0x8] sm:$0xff]
        %437 = vrot.lane.b32.xlu0 %v433, 74
        %v438 = vpop.permute.xlu0 %437
        %439 = vrot.lane.b32.xlu0 %v434, 74
        %v440 = vpop.permute.xlu0 %439
        %s443 = scalar_lea.vmem %s143, 48 [#allocation7]
        %444 = vst.msk [vmem:[%s443] sm:$0xff] %vm404, %v438
        %445 = vst.msk [vmem:[%s443 + $0x8] sm:$0xff] %vm404, %v440
        %v446 = vld [vmem:[#allocation3] sm:$0xff]
        %v447 = vld [vmem:[#allocation3 + $0x8] sm:$0xff]
        %450 = vrot.lane.b32.xlu0 %v446, 56
        %v451 = vpop.permute.xlu0 %450
        %452 = vrot.lane.b32.xlu0 %v447, 56
        %v453 = vpop.permute.xlu0 %452
        %s456 = scalar_lea.vmem %s143, 64 [#allocation7]
        %457 = vst.msk [vmem:[%s456] sm:$0xff] %vm404, %v451
        %458 = vst.msk [vmem:[%s456 + $0x8] sm:$0xff] %vm404, %v453
        %v459 = vld [vmem:[#allocation3] sm:$0xff]
        %v460 = vld [vmem:[#allocation3 + $0x8] sm:$0xff]
        %463 = vrot.lane.b32.xlu0 %v459, 38
        %v464 = vpop.permute.xlu0 %463
        %465 = vrot.lane.b32.xlu0 %v460, 38
        %v466 = vpop.permute.xlu0 %465
        %s469 = scalar_lea.vmem %s143, 80 [#allocation7]
        %470 = vst.msk [vmem:[%s469] sm:$0xff] %vm404, %v464
        %471 = vst.msk [vmem:[%s469 + $0x8] sm:$0xff] %vm404, %v466
        %v472 = vld [vmem:[#allocation3] sm:$0xff]
        %v473 = vld [vmem:[#allocation3 + $0x8] sm:$0xff]
        %476 = vrot.lane.b32.xlu0 %v472, 20
        %v477 = vpop.permute.xlu0 %476
        %478 = vrot.lane.b32.xlu0 %v473, 20
        %v479 = vpop.permute.xlu0 %478
        %s482 = scalar_lea.vmem %s143, 96 [#allocation7]
        %483 = vst.msk [vmem:[%s482] sm:$0xff] %vm404, %v477
        %484 = vst.msk [vmem:[%s482 + $0x8] sm:$0xff] %vm404, %v479
        %s485 = sand.u32 %s52, 1
        %s486 = scalar_lea.sflag [#allocation6], %s485
        %s487 = sand.u32 %s52, 1
        %s488 = smul.addr %s487, 112
        %s489 = scalar_lea.vmem [#allocation7], %s488
        // Predicated region
        $region29: #{tpu_custom_call.1} parent=23 // pred_check
          %p490 = pneg %p62
        $region30: #{tpu_custom_call.1} parent=23 // pred_check_branch
          %492 = sbr.rel (%p490) target = $region32
        $region31: #{tpu_custom_call.1} parent=23 // pred_region
          %s493 = smul.u32 7, %s18
          %s494 = ssub.s32 8, %s493
          %p495 = scmp.lt.s32.totalorder %s494, 7
          %s496 = scalar_select %p495, %s494, 7
          %s497 = smul.u32 128, %s496
          %s498 = smul.u32 %s497, 2
          %s500 = ssub.s32 1792, %s498
          %501 = vsyncadd %s486, %s500
          %p502 = scmp.ne.s32.totalorder 0, %s498
          %s503 = smul.addr %s493, 2
          %s504 = smul.addr %s503, 128
          %s505 = scalar_lea.hbm %s1, %s504
          %s506 = smul.u32 %s496, 2
          %s507 = smul.u32 8, %s506
          %s508 = sshll.u32 %s489, 4
          %s509 = int_to_ptr.vmem [resolvable:$true] %s508
          %s510 = sshll.u32 %s507, 4
          %514 = dma.vmem_to_hbm [thread:$0]  (%p502), %s509, %s510, %s505, %s486, 128, 128, 8
        $region32: #{tpu_custom_call.1} parent=23 // pred_fallthru
          _
      $region24: #{tpu_custom_call.1} parent=5 // pred_fallthru
        _
      %p515 = scmp.le.s32.totalorder 2, %s13
      // Predicated region
      $region33: #{tpu_custom_call.1} parent=5 // pred_check
        %p516 = pneg %p515
      $region34: #{tpu_custom_call.1} parent=5 // pred_check_branch
        %518 = sbr.rel (%p516) target = $region36
      $region35: #{tpu_custom_call.1} parent=5 // pred_region
        %s519 = ssub.s32 %s13, 2
        // Predicated region
        $region37: #{tpu_custom_call.1} parent=35 // pred_check
          %p520 = pneg %p68
        $region38: #{tpu_custom_call.1} parent=35 // pred_check_branch
          %522 = sbr.rel (%p520) target = $region40
        $region39: #{tpu_custom_call.1} parent=35 // pred_region
          %s523 = sand.u32 %s53, 1
          %s524 = scalar_lea.sflag [#allocation6], %s523
          %s525 = sand.u32 %s53, 1
          %s526 = smul.addr %s525, 112
          %s527 = scalar_lea.vmem [#allocation7], %s526
          %528 = dma.done %s524, 1792
        $region40: #{tpu_custom_call.1} parent=35 // pred_fallthru
          _
      $region36: #{tpu_custom_call.1} parent=5 // pred_fallthru
        _
    $region6: #{tpu_custom_call.1} parent=1 // loop_footer
      %s17 = sadd.s32 1, %s13
    $region7: #{tpu_custom_call.1} parent=1 // loop_footer_branch
      %12 = sbr.rel target = $region3
    $region8: #{tpu_custom_call.1} parent=1 // loop_exit
      _
    %529 = vsyncpa [#allocation5], 1
    %s530 = scalar_lea.sflag [#allocation5], 1
    %531 = vsyncpa %s530, 1
    %532 = vsyncpa [#allocation6], 1
    %s533 = scalar_lea.sflag [#allocation6], 1
    %534 = vsyncpa %s533, 1

</llo_original>
